<compile_context>
chip_gen: v7x
topology: tpu7x:2x2x1
jax: 0.10.0
libtpu: 0.0.40
codegen_flags: <defaults>
</compile_context>

<pallas_src>
import jax
import jax.numpy as jnp
from jax.experimental import pallas as pl
from jax.experimental.pallas import tpu as pltpu


def _round_up(x: int, n: int) -> int:
    return ((x + n - 1) // n) * n


def _sublane_multiple(dtype) -> int:
    # 8 for 4-byte, 16 for 2-byte, 32 for 1-byte dtypes.
    return max(8, 32 // jnp.dtype(dtype).itemsize)


def _pick_tile(nrows: int, target: int, sub: int) -> int:
    """Row tile: multiple of `sub`, capped at `target`, full extent if tiny.

    Prefers >= 2 tiles (when there are enough rows) so dimension_semantics
    ("parallel",) can balance both TensorCores on v7x.
    """
    target = max(sub, (target // sub) * sub)
    two_way = _round_up(pl.cdiv(nrows, 2), sub)
    tm = min(target, two_way)
    return nrows if tm >= nrows else tm


def _matmul_kernel(x_ref, basis_ref, o_ref):
    # (TM, K) @ (K, N) -> (TM, N); accumulate in f32 on the MXU, cast back to
    # the activation dtype (keeps bf16 activations bf16, halving HBM writes).
    o_ref[...] = jnp.dot(
        x_ref[...], basis_ref[...], preferred_element_type=jnp.float32
    ).astype(o_ref.dtype)


def make_trend_basis_params(expansion_coefficient_dim: int, seq_length: int):
    """Deterministic, matches the PyTorch __init__ exactly (0**0 == 1)."""
    t = jnp.arange(seq_length, dtype=jnp.float32) / float(seq_length)  # (S,)
    # stack over i along dim=1 -> (S, E); then .T -> (E, S)
    basis = jnp.stack(
        [t ** i for i in range(expansion_coefficient_dim)], axis=1
    ).T
    return basis  # (E, S)


def _block_diag_basis(basis: jax.Array, pack: int) -> jax.Array:
    """(E, S) -> block-diagonal (pack*E, pack*S) with `pack` diagonal copies."""
    e, s = basis.shape
    eye = jnp.eye(pack, dtype=basis.dtype)
    # bd[p*e + i, q*s + j] = (p == q) * basis[i, j]
    return jnp.einsum("pq,ij->piqj", eye, basis).reshape(pack * e, pack * s)


def trend_basis_forward(
    x: jax.Array, basis: jax.Array, *, tile_rows: int = 65536
) -> jax.Array:
    """x: (..., E), basis: (E, S) -> (..., S) in x.dtype."""
    *lead, e = x.shape
    e_b, s = basis.shape
    assert e == e_b, f"last dim of x ({e}) must match basis rows ({e_b})"

    dtype = x.dtype
    basis = basis.astype(dtype)  # avoid silent bf16->f32 VPU upcast per step
    sub = _sublane_multiple(dtype)

    x2d = x.reshape((-1, e))  # (M, E), free reshape
    m = x2d.shape[0]

    compiler_params = pltpu.CompilerParams(
        dimension_semantics=("parallel",),
        vmem_limit_bytes=32 * 1024 * 1024,
    )

    packable = (128 % e == 0) and (128 // e > 1)
    if packable:
        # ---- lane-dense packed path ----------------------------------------
        pack = 128 // e                      # logical rows per packed row
        m_pad = _round_up(m, pack)
        if m_pad != m:
            # Small pad (< pack rows) so the lane-repack reshape is legal.
            x2d = jnp.pad(x2d, ((0, m_pad - m), (0, 0)))
        mp = m_pad // pack
        xp = x2d.reshape((mp, pack * e))     # free reshape: lane-dense rows
        basis_p = _block_diag_basis(basis, pack)   # (pack*E, pack*S)
        sp = pack * s

        tm = _pick_tile(mp, max(1, tile_rows // pack), sub)
        grid = (pl.cdiv(mp, tm),)

        out_p = pl.pallas_call(
            _matmul_kernel,
            out_shape=jax.ShapeDtypeStruct((mp, sp), dtype),
            grid_spec=pl.GridSpec(
                grid=grid,
                in_specs=[
                    pl.BlockSpec((tm, pack * e), lambda i: (i, 0)),  # rows
                    pl.BlockSpec((pack * e, sp), lambda i: (0, 0)),  # basis
                ],
                out_specs=pl.BlockSpec((tm, sp), lambda i: (i, 0)),
            ),
            compiler_params=compiler_params,
        )(xp, basis_p)

        out2d = out_p.reshape((m_pad, s))    # free reshape back to (rows, S)
        if m_pad != m:
            out2d = out2d[:m]
        return out2d.reshape((*lead, s))

    # ---- fallback path (E does not divide 128): lane-sparse but correct ----
    tm = _pick_tile(m, tile_rows, sub)
    grid = (pl.cdiv(m, tm),)   # ragged last block handled natively

    out2d = pl.pallas_call(
        _matmul_kernel,
        out_shape=jax.ShapeDtypeStruct((m, s), dtype),
        grid_spec=pl.GridSpec(
            grid=grid,
            in_specs=[
                pl.BlockSpec((tm, e), lambda i: (i, 0)),   # streamed row tiles
                pl.BlockSpec((e, s), lambda i: (0, 0)),    # resident basis
            ],
            out_specs=pl.BlockSpec((tm, s), lambda i: (i, 0)),
        ),
        compiler_params=compiler_params,
    )(x2d, basis)
    return out2d.reshape((*lead, s))


if __name__ == "__main__":
    key = jax.random.PRNGKey(0)

    # Case 1: shapes consistent with the module (TrendBasis(E=4, S=16),
    # x: (B, M, E)).  200 rows -> exercises the small pack-multiple pad.
    B, M, E, S = 2, 100, 4, 16
    x = jax.random.uniform(key, (B, M, E), dtype=jnp.float32)
    basis = make_trend_basis_params(E, S)
    out = jax.block_until_ready(trend_basis_forward(x, basis))
    ref = jnp.matmul(x, basis)
    assert out.shape == (B, M, S), out.shape
    assert jnp.allclose(out, ref, atol=1e-5, rtol=1e-5), "mismatch (case 1)"

    # Case 2: larger row count -> multi-tile packed path with ragged last block.
    x2 = jax.random.uniform(jax.random.PRNGKey(1), (3, 700, E), dtype=jnp.float32)
    out2 = jax.block_until_ready(trend_basis_forward(x2, basis))
    assert jnp.allclose(out2, jnp.matmul(x2, basis), atol=1e-5, rtol=1e-5), \
        "mismatch (case 2)"

    # Case 3: E does not divide 128 -> fallback (unpacked) path.
    E3, S3 = 3, 8
    x3 = jax.random.uniform(jax.random.PRNGKey(2), (2, 4, E3), dtype=jnp.float32)
    basis3 = make_trend_basis_params(E3, S3)
    out3 = jax.block_until_ready(trend_basis_forward(x3, basis3))
    assert jnp.allclose(out3, jnp.matmul(x3, basis3), atol=1e-5, rtol=1e-5), \
        "mismatch (case 3)"

    print("KERNEL_OK")
</pallas_src>

<mosaic_0001>
module attributes {stable_mosaic.version = 11 : i64} {
  func.func @_matmul_kernel(%arg0: i32, %arg1: memref<7x128xf32, #tpu.memory_space<vmem>>, %arg2: memref<128x512xf32, #tpu.memory_space<vmem>>, %arg3: memref<7x512xf32, #tpu.memory_space<vmem>>) attributes {dimension_semantics = [#tpu.dimension_semantics<parallel>], iteration_bounds = array<i64: 1>, scalar_prefetch = 0 : i64, scratch_operands = 0 : i64, tpu.core_type = #tpu.core_type<tc>, window_params = [{transform_indices = @transform_0, window_bounds = array<i64: 7, 128>}, {pipeline_mode = #tpu.pipeline_mode<synchronous>, transform_indices = @transform_1, window_bounds = array<i64: 128, 512>}, {transform_indices = @transform_2, window_bounds = array<i64: 7, 512>}]} {
    %c0 = arith.constant 0 : index
    %c0_0 = arith.constant 0 : index
    %0 = vector.load %arg1[%c0, %c0_0] : memref<7x128xf32, #tpu.memory_space<vmem>>, vector<7x128xf32>
    %c0_1 = arith.constant 0 : index
    %c0_2 = arith.constant 0 : index
    %1 = vector.load %arg2[%c0_1, %c0_2] : memref<128x512xf32, #tpu.memory_space<vmem>>, vector<128x512xf32>
    %cst = arith.constant dense<0.000000e+00> : vector<7x512xf32>
    %2 = tpu.matmul %0, %1, %cst {dimension_numbers = #tpu.dot_dimension_numbers<[1], [0], [0], [1], [0, 0, 1, 1], [], []>} : vector<7x128xf32>, vector<128x512xf32>, vector<7x512xf32> -> vector<7x512xf32>
    %c0_3 = arith.constant 0 : index
    %c0_4 = arith.constant 0 : index
    %3 = vector.load %arg3[%c0_3, %c0_4] : memref<7x512xf32, #tpu.memory_space<vmem>>, vector<7x512xf32>
    tpu.vector_store %arg3[%c0_3, %c0_4], %2 {strides = array<i32>} : memref<7x512xf32, #tpu.memory_space<vmem>>, vector<7x512xf32>,
    return
  }
  func.func @transform_0(%arg0: i32) -> (i32, i32) {
    %c0_i32 = arith.constant 0 : i32
    %c0_i32_0 = arith.constant 0 : i32
    return %arg0, %c0_i32 : i32, i32
  }
  func.func @transform_1(%arg0: i32) -> (i32, i32) {
    %c0_i32 = arith.constant 0 : i32
    %c0_i32_0 = arith.constant 0 : i32
    %c0_i32_1 = arith.constant 0 : i32
    return %c0_i32, %c0_i32_0 : i32, i32
  }
  func.func @transform_2(%arg0: i32) -> (i32, i32) {
    %c0_i32 = arith.constant 0 : i32
    %c0_i32_0 = arith.constant 0 : i32
    return %arg0, %c0_i32 : i32, i32
  }
}

</mosaic_0001>

<llo_original>
// kernel: tpu_custom_call.1
$region0: #{tpu_custom_call.1}
  #allocation0 [shape = 'u32[]', space=smem, size = 0x4, offset = 0x4, fixed_abs, tag = 'smem constant byte address 0x4 - core index']
  #allocation1 [shape = 'u32[144,128]{1,0:T(1,128)}', space=vmem, size = 0x12000, scoped, tag = 'internal scratch']
  %s0 = inlined_call_operand.hbm [shape: f32[7,128], index: 0, kind: input, shape index: {}]
  %s1 = inlined_call_operand.hbm [shape: f32[128,512], index: 1, kind: input, shape index: {}]
  %s2 = inlined_call_operand.hbm [shape: f32[7,512], index: 2, kind: output, shape index: {}]
  %s3 = sld [smem:[#allocation0]]
  $region26: #{tpu_custom_call.1} parent=0
    _
  %s5 = ssub.s32 1, %s3
  %s6 = scalar_select 0, %s5, %s3
  $region1: #{tpu_custom_call.1} parent=0
    #allocation2 [shape = 'u8[4096]{0}', space=vmem, size = 0x1000, scoped, tag = 'input window, operand 0, single buffered']
    #allocation3 [shape = 's32[1]{0}', space=sflag, size = 0x4, scoped, tag = 'scoped memory for tpu_custom_call.1']
    #allocation4 [shape = 's32[1]{0}', space=sflag, size = 0x4, scoped, tag = 'scoped memory for tpu_custom_call.1']
    #allocation5 [shape = 'u8[262144]{0}', space=vmem, size = 0x40000, scoped, tag = 'input window, operand 1, single buffered']
    #allocation6 [shape = 's32[1]{0}', space=sflag, size = 0x4, scoped, tag = 'scoped memory for tpu_custom_call.1']
    #allocation7 [shape = 'u8[16384]{0}', space=vmem, size = 0x4000, scoped, tag = 'output window, operand 0, single buffered']
    %7 = vsyncpa [#allocation3], 0
    %8 = vsyncpa [#allocation6], 0
    %9 = vsyncpa [#allocation4], 0
    // Predicated region
    $region2: #{tpu_custom_call.1} parent=1 // pred_check
      _
    $region3: #{tpu_custom_call.1} parent=1 // pred_check_branch
      %11 = sbr.rel (0) target = $region5
    $region4: #{tpu_custom_call.1} parent=1 // pred_region
      %s13 = ssub.s32 128, 128
      %14 = vsyncadd [#allocation3], %s13
      %s16 = sshll.u32 [#allocation2], 4
      %s17 = int_to_ptr.vmem [resolvable:$true] %s16
      %19 = dma.hbm_to_vmem [thread:$0]  %s0, 128, %s17, [#allocation3]
    $region5: #{tpu_custom_call.1} parent=1 // pred_fallthru
      _
    // Predicated region
    $region6: #{tpu_custom_call.1} parent=1 // pred_check
      _
    $region7: #{tpu_custom_call.1} parent=1 // pred_check_branch
      %21 = sbr.rel (0) target = $region9
    $region8: #{tpu_custom_call.1} parent=1 // pred_region
      %s23 = ssub.s32 8192, 8192
      %24 = vsyncadd [#allocation6], %s23
      %s25 = sshll.u32 [#allocation5], 4
      %s26 = int_to_ptr.vmem [resolvable:$true] %s25
      %31 = dma.hbm_to_vmem [thread:$0]  %s1, 8192, %s26, [#allocation6], 512, 512, 32
    $region9: #{tpu_custom_call.1} parent=1 // pred_fallthru
      _
    // Predicated region
    $region10: #{tpu_custom_call.1} parent=1 // pred_check
      _
    $region11: #{tpu_custom_call.1} parent=1 // pred_check_branch
      %33 = sbr.rel (0) target = $region13
    $region12: #{tpu_custom_call.1} parent=1 // pred_region
      %34 = dma.done [#allocation3], 128
    $region13: #{tpu_custom_call.1} parent=1 // pred_fallthru
      _
    // Predicated region
    $region14: #{tpu_custom_call.1} parent=1 // pred_check
      _
    $region15: #{tpu_custom_call.1} parent=1 // pred_check_branch
      %36 = sbr.rel (0) target = $region17
    $region16: #{tpu_custom_call.1} parent=1 // pred_region
      %37 = dma.done [#allocation6], 8192
    $region17: #{tpu_custom_call.1} parent=1 // pred_fallthru
      _
    %v38 = vld [vmem:[#allocation2] sm:$0x7f]
    %v39 = vld [vmem:[#allocation5] sm:$0xff]
    %v40 = vld [vmem:[#allocation5 + $0x8] sm:$0xff]
    %v41 = vld [vmem:[#allocation5 + $0x10] sm:$0xff]
    %v42 = vld [vmem:[#allocation5 + $0x18] sm:$0xff]
    %v43 = vld [vmem:[#allocation5 + $0x20] sm:$0xff]
    %v44 = vld [vmem:[#allocation5 + $0x28] sm:$0xff]
    %v45 = vld [vmem:[#allocation5 + $0x30] sm:$0xff]
    %v46 = vld [vmem:[#allocation5 + $0x38] sm:$0xff]
    %v47 = vld [vmem:[#allocation5 + $0x40] sm:$0xff]
    %v48 = vld [vmem:[#allocation5 + $0x48] sm:$0xff]
    %v49 = vld [vmem:[#allocation5 + $0x50] sm:$0xff]
    %v50 = vld [vmem:[#allocation5 + $0x58] sm:$0xff]
    %v51 = vld [vmem:[#allocation5 + $0x60] sm:$0xff]
    %v52 = vld [vmem:[#allocation5 + $0x68] sm:$0xff]
    %v53 = vld [vmem:[#allocation5 + $0x70] sm:$0xff]
    %v54 = vld [vmem:[#allocation5 + $0x78] sm:$0xff]
    %v55 = vld [vmem:[#allocation5 + $0x80] sm:$0xff]
    %v56 = vld [vmem:[#allocation5 + $0x88] sm:$0xff]
    %v57 = vld [vmem:[#allocation5 + $0x90] sm:$0xff]
    %v58 = vld [vmem:[#allocation5 + $0x98] sm:$0xff]
    %v59 = vld [vmem:[#allocation5 + $0xa0] sm:$0xff]
    %v60 = vld [vmem:[#allocation5 + $0xa8] sm:$0xff]
    %v61 = vld [vmem:[#allocation5 + $0xb0] sm:$0xff]
    %v62 = vld [vmem:[#allocation5 + $0xb8] sm:$0xff]
    %v63 = vld [vmem:[#allocation5 + $0xc0] sm:$0xff]
    %v64 = vld [vmem:[#allocation5 + $0xc8] sm:$0xff]
    %v65 = vld [vmem:[#allocation5 + $0xd0] sm:$0xff]
    %v66 = vld [vmem:[#allocation5 + $0xd8] sm:$0xff]
    %v67 = vld [vmem:[#allocation5 + $0xe0] sm:$0xff]
    %v68 = vld [vmem:[#allocation5 + $0xe8] sm:$0xff]
    %v69 = vld [vmem:[#allocation5 + $0xf0] sm:$0xff]
    %v70 = vld [vmem:[#allocation5 + $0xf8] sm:$0xff]
    %v71 = vld [vmem:[#allocation5 + $0x100] sm:$0xff]
    %v72 = vld [vmem:[#allocation5 + $0x108] sm:$0xff]
    %v73 = vld [vmem:[#allocation5 + $0x110] sm:$0xff]
    %v74 = vld [vmem:[#allocation5 + $0x118] sm:$0xff]
    %v75 = vld [vmem:[#allocation5 + $0x120] sm:$0xff]
    %v76 = vld [vmem:[#allocation5 + $0x128] sm:$0xff]
    %v77 = vld [vmem:[#allocation5 + $0x130] sm:$0xff]
    %v78 = vld [vmem:[#allocation5 + $0x138] sm:$0xff]
    %v79 = vld [vmem:[#allocation5 + $0x140] sm:$0xff]
    %v80 = vld [vmem:[#allocation5 + $0x148] sm:$0xff]
    %v81 = vld [vmem:[#allocation5 + $0x150] sm:$0xff]
    %v82 = vld [vmem:[#allocation5 + $0x158] sm:$0xff]
    %v83 = vld [vmem:[#allocation5 + $0x160] sm:$0xff]
    %v84 = vld [vmem:[#allocation5 + $0x168] sm:$0xff]
    %v85 = vld [vmem:[#allocation5 + $0x170] sm:$0xff]
    %v86 = vld [vmem:[#allocation5 + $0x178] sm:$0xff]
    %v87 = vld [vmem:[#allocation5 + $0x180] sm:$0xff]
    %v88 = vld [vmem:[#allocation5 + $0x188] sm:$0xff]
    %v89 = vld [vmem:[#allocation5 + $0x190] sm:$0xff]
    %v90 = vld [vmem:[#allocation5 + $0x198] sm:$0xff]
    %v91 = vld [vmem:[#allocation5 + $0x1a0] sm:$0xff]
    %v92 = vld [vmem:[#allocation5 + $0x1a8] sm:$0xff]
    %v93 = vld [vmem:[#allocation5 + $0x1b0] sm:$0xff]
    %v94 = vld [vmem:[#allocation5 + $0x1b8] sm:$0xff]
    %v95 = vld [vmem:[#allocation5 + $0x1c0] sm:$0xff]
    %v96 = vld [vmem:[#allocation5 + $0x1c8] sm:$0xff]
    %v97 = vld [vmem:[#allocation5 + $0x1d0] sm:$0xff]
    %v98 = vld [vmem:[#allocation5 + $0x1d8] sm:$0xff]
    %v99 = vld [vmem:[#allocation5 + $0x1e0] sm:$0xff]
    %v100 = vld [vmem:[#allocation5 + $0x1e8] sm:$0xff]
    %v101 = vld [vmem:[#allocation5 + $0x1f0] sm:$0xff]
    %v102 = vld [vmem:[#allocation5 + $0x1f8] sm:$0xff]
    %103 = vmatprep.subr.mxu0 %v40
    %104 = vmatpush1.msra.mxu0 %v39
    %105 = vmatprep.subr.mxu0 %v44
    %106 = vmatpush1.msra.mxu0 %v43
    %107 = vmatprep.subr.mxu0 %v48
    %108 = vmatpush1.msra.mxu0 %v47
    %109 = vmatprep.subr.mxu0 %v52
    %110 = vmatpush1.msra.mxu0 %v51
    %111 = vmatprep.subr.mxu0 %v56
    %112 = vmatpush1.msra.mxu0 %v55
    %113 = vmatprep.subr.mxu0 %v60
    %114 = vmatpush1.msra.mxu0 %v59
    %115 = vmatprep.subr.mxu0 %v64
    %116 = vmatpush1.msra.mxu0 %v63
    %117 = vmatprep.subr.mxu0 %v68
    %118 = vmatpush1.msra.mxu0 %v67
    %119 = vmatprep.subr.mxu0 %v72
    %120 = vmatpush1.msra.mxu0 %v71
    %121 = vmatprep.subr.mxu0 %v76
    %122 = vmatpush1.msra.mxu0 %v75
    %123 = vmatprep.subr.mxu0 %v80
    %124 = vmatpush1.msra.mxu0 %v79
    %125 = vmatprep.subr.mxu0 %v84
    %126 = vmatpush1.msra.mxu0 %v83
    %127 = vmatprep.subr.mxu0 %v88
    %128 = vmatpush1.msra.mxu0 %v87
    %129 = vmatprep.subr.mxu0 %v92
    %130 = vmatpush1.msra.mxu0 %v91
    %131 = vmatprep.subr.mxu0 %v96
    %132 = vmatpush1.msra.mxu0 %v95
    %133 = vmatprep.subr.mxu0 %v100
    %134 = vmatpush1.msra.mxu0 %v99
    %135 = vmatprep.subr.mxu0 0.0
    %136 = vmatpush1.msra.mxu0 0.0
    %137 = vmatprep.subr.mxu0 0.0
    %138 = vmatpush1.msra.mxu0 0.0
    %139 = vmatprep.subr.mxu0 0.0
    %140 = vmatpush1.msra.mxu0 0.0
    %141 = vmatprep.subr.mxu0 0.0
    %142 = vmatpush1.msra.mxu0 0.0
    %143 = vmatprep.subr.mxu0 0.0
    %144 = vmatpush1.msra.mxu0 0.0
    %145 = vmatprep.subr.mxu0 0.0
    %146 = vmatpush1.msra.mxu0 0.0
    %147 = vmatprep.subr.mxu0 0.0
    %148 = vmatpush1.msra.mxu0 0.0
    %149 = vmatprep.subr.mxu0 0.0
    %150 = vmatpush1.msra.mxu0 0.0
    %151 = vmatprep.subr.mxu0 0.0
    %152 = vmatpush1.msra.mxu0 0.0
    %153 = vmatprep.subr.mxu0 0.0
    %154 = vmatpush1.msra.mxu0 0.0
    %155 = vmatprep.subr.mxu0 0.0
    %156 = vmatpush1.msra.mxu0 0.0
    %157 = vmatprep.subr.mxu0 0.0
    %158 = vmatpush1.msra.mxu0 0.0
    %159 = vmatprep.subr.mxu0 0.0
    %160 = vmatpush1.msra.mxu0 0.0
    %161 = vmatprep.subr.mxu0 0.0
    %162 = vmatpush1.msra.mxu0 0.0
    %163 = vmatprep.subr.mxu0 0.0
    %164 = vmatpush1.msra.mxu0 0.0
    %165 = vmatprep.subr.mxu0 0.0
    %166 = vmatpush1.msra.mxu0 0.0
    %167 = vmatprep.mubr.f32.mxu0 0.0
    %168 = vmatmul.mubr.f32.gmra.mrb[0].mxu0 %v38
    %v169 = vpop.f32.mrb[0].mxu0
    %v170 = vadd.f32 0.0, %v169
    %v171 = vpop.f32.mrb[0].mxu0
    %v172 = vadd.f32 0.0, %v171
    %173 = vdwg.mxu0
    %174 = vmatprep.subr.mxu0 %v42
    %175 = vmatpush1.msra.mxu0 %v41
    %176 = vmatprep.subr.mxu0 %v46
    %177 = vmatpush1.msra.mxu0 %v45
    %178 = vmatprep.subr.mxu0 %v50
    %179 = vmatpush1.msra.mxu0 %v49
    %180 = vmatprep.subr.mxu0 %v54
    %181 = vmatpush1.msra.mxu0 %v53
    %182 = vmatprep.subr.mxu0 %v58
    %183 = vmatpush1.msra.mxu0 %v57
    %184 = vmatprep.subr.mxu0 %v62
    %185 = vmatpush1.msra.mxu0 %v61
    %186 = vmatprep.subr.mxu0 %v66
    %187 = vmatpush1.msra.mxu0 %v65
    %188 = vmatprep.subr.mxu0 %v70
    %189 = vmatpush1.msra.mxu0 %v69
    %190 = vmatprep.subr.mxu0 %v74
    %191 = vmatpush1.msra.mxu0 %v73
    %192 = vmatprep.subr.mxu0 %v78
    %193 = vmatpush1.msra.mxu0 %v77
    %194 = vmatprep.subr.mxu0 %v82
    %195 = vmatpush1.msra.mxu0 %v81
    %196 = vmatprep.subr.mxu0 %v86
    %197 = vmatpush1.msra.mxu0 %v85
    %198 = vmatprep.subr.mxu0 %v90
    %199 = vmatpush1.msra.mxu0 %v89
    %200 = vmatprep.subr.mxu0 %v94
    %201 = vmatpush1.msra.mxu0 %v93
    %202 = vmatprep.subr.mxu0 %v98
    %203 = vmatpush1.msra.mxu0 %v97
    %204 = vmatprep.subr.mxu0 %v102
    %205 = vmatpush1.msra.mxu0 %v101
    %206 = vmatprep.subr.mxu0 0.0
    %207 = vmatpush1.msra.mxu0 0.0
    %208 = vmatprep.subr.mxu0 0.0
    %209 = vmatpush1.msra.mxu0 0.0
    %210 = vmatprep.subr.mxu0 0.0
    %211 = vmatpush1.msra.mxu0 0.0
    %212 = vmatprep.subr.mxu0 0.0
    %213 = vmatpush1.msra.mxu0 0.0
    %214 = vmatprep.subr.mxu0 0.0
    %215 = vmatpush1.msra.mxu0 0.0
    %216 = vmatprep.subr.mxu0 0.0
    %217 = vmatpush1.msra.mxu0 0.0
    %218 = vmatprep.subr.mxu0 0.0
    %219 = vmatpush1.msra.mxu0 0.0
    %220 = vmatprep.subr.mxu0 0.0
    %221 = vmatpush1.msra.mxu0 0.0
    %222 = vmatprep.subr.mxu0 0.0
    %223 = vmatpush1.msra.mxu0 0.0
    %224 = vmatprep.subr.mxu0 0.0
    %225 = vmatpush1.msra.mxu0 0.0
    %226 = vmatprep.subr.mxu0 0.0
    %227 = vmatpush1.msra.mxu0 0.0
    %228 = vmatprep.subr.mxu0 0.0
    %229 = vmatpush1.msra.mxu0 0.0
    %230 = vmatprep.subr.mxu0 0.0
    %231 = vmatpush1.msra.mxu0 0.0
    %232 = vmatprep.subr.mxu0 0.0
    %233 = vmatpush1.msra.mxu0 0.0
    %234 = vmatprep.subr.mxu0 0.0
    %235 = vmatpush1.msra.mxu0 0.0
    %236 = vmatprep.subr.mxu0 0.0
    %237 = vmatpush1.msra.mxu0 0.0
    %238 = vmatprep.mubr.f32.mxu0 0.0
    %239 = vmatmul.mubr.f32.gmra.mrb[0].mxu0 %v38
    %v240 = vpop.f32.mrb[0].mxu0
    %v241 = vadd.f32 0.0, %v240
    %v242 = vpop.f32.mrb[0].mxu0
    %v243 = vadd.f32 0.0, %v242
    %244 = vdwg.mxu0
    %245 = vst [vmem:[#allocation7] sm:$0x7f] %v170
    %246 = vst [vmem:[#allocation7 + $0x8] sm:$0x7f] %v172
    %247 = vst [vmem:[#allocation7 + $0x10] sm:$0x7f] %v241
    %248 = vst [vmem:[#allocation7 + $0x18] sm:$0x7f] %v243
    // Predicated region
    $region18: #{tpu_custom_call.1} parent=1 // pred_check
      _
    $region19: #{tpu_custom_call.1} parent=1 // pred_check_branch
      %250 = sbr.rel (0) target = $region21
    $region20: #{tpu_custom_call.1} parent=1 // pred_region
      %s252 = ssub.s32 512, 512
      %253 = vsyncadd [#allocation4], %s252
      %s255 = sshll.u32 [#allocation7], 4
      %s256 = int_to_ptr.vmem [resolvable:$true] %s255
      %258 = dma.vmem_to_hbm [thread:$0]  %s256, 512, %s2, [#allocation4]
    $region21: #{tpu_custom_call.1} parent=1 // pred_fallthru
      _
    // Predicated region
    $region22: #{tpu_custom_call.1} parent=1 // pred_check
      _
    $region23: #{tpu_custom_call.1} parent=1 // pred_check_branch
      %260 = sbr.rel (0) target = $region25
    $region24: #{tpu_custom_call.1} parent=1 // pred_region
      %261 = dma.done [#allocation4], 512
    $region25: #{tpu_custom_call.1} parent=1 // pred_fallthru
      _
    %262 = vsyncpa [#allocation3], 1
    %263 = vsyncpa [#allocation6], 1
    %264 = vsyncpa [#allocation4], 1

</llo_original>
